<compile_context>
chip_gen: v7x
topology: tpu7x:2x2x1
jax: 0.10.0
libtpu: 0.0.40
codegen_flags: <defaults>
</compile_context>

<pallas_src>
import functools

import jax
import jax.numpy as jnp
from jax.experimental import pallas as pl
from jax.experimental.pallas import tpu as pltpu

EPS = 1e-5


# --------------------------------------------------------------------------
# Budget / tiling helpers
# --------------------------------------------------------------------------
def _vmem_budgets():
    """Generation-aware (scoped vmem limit, per-block byte budget)."""
    try:
        vmem_cap = pltpu.get_tpu_info().vmem_capacity_bytes
    except Exception:
        vmem_cap = 64 * 1024 * 1024  # conservative (v7x-sized) fallback
    # Request at most half of physical VMEM; block budget leaves room for
    # double-buffered in+out (~4x block) plus in-kernel temporaries.
    vmem_limit = min(vmem_cap // 2, 64 * 1024 * 1024)
    block_budget = vmem_limit // 6
    return vmem_limit, block_budget


def _sublane_quantum(dtype):
    """Packed sublane quantum: 8 for 4-byte, 16 for 2-byte, 32 for 1-byte."""
    return max(8, 32 // jnp.dtype(dtype).itemsize)


def _pick_channel_tile(cs, bytes_per_channel, quantum, budget):
    """Largest channel tile (multiple of `quantum`, dividing cs) that fits
    `budget`, preferring >= 4 (then >= 2) grid steps so the parallel axis can
    be sharded across TensorCores and pipelined.  Returns None if nothing
    fits (caller falls back to the two-phase reduction path)."""
    if cs % quantum != 0:
        # Block dim must be a multiple of the quantum or the full dim.
        return cs if cs * bytes_per_channel <= budget else None
    fitting = [d for d in range(quantum, cs + 1, quantum)
               if cs % d == 0 and d * bytes_per_channel <= budget]
    if not fitting:
        return None
    for steps in (4, 2, 1):
        ok = [d for d in fitting if cs // d >= steps]
        if ok:
            return max(ok)
    return max(fitting)


def _pick_lane_tile(l_pad, per_lane_bytes, budget):
    """Largest multiple of 128 dividing l_pad whose block fits `budget`."""
    candidates = [d for d in range(128, l_pad + 1, 128)
                  if l_pad % d == 0 and d * per_lane_bytes <= budget]
    return max(candidates) if candidates else 128


# --------------------------------------------------------------------------
# Path A: fused single-kernel (whole per-channel slab resident in VMEM)
# --------------------------------------------------------------------------
def _ssn_fused_kernel(gamma_ref, beta_ref, x_ref, o_ref, *, inv_n, pad_count):
    # gamma_ref, beta_ref: (CT, 1) blocks;  x_ref, o_ref: (N, CT, L_pad) blocks.
    # Pass 1 (VMEM read): per-channel sum -> mean (zero pad contributes 0).
    s1 = jnp.sum(x_ref[...].astype(jnp.float32), axis=(0, 2), keepdims=True)
    mean = s1 * inv_n                                              # (1, CT, 1)

    # Pass 2 (VMEM re-read): robust two-pass variance mean((x - mean)^2).
    d = x_ref[...].astype(jnp.float32) - mean
    s2 = jnp.sum(d * d, axis=(0, 2), keepdims=True)
    if pad_count:
        # Each zero-padded element contributed exactly mean^2; remove it.
        s2 = s2 - float(pad_count) * mean * mean
    var = jnp.maximum(s2 * inv_n, 0.0)
    inv_std = jax.lax.rsqrt(var + EPS)

    gamma = gamma_ref[...].astype(jnp.float32)[None, :, :]          # (1, CT, 1)
    beta = beta_ref[...].astype(jnp.float32)[None, :, :]
    scale = inv_std * gamma
    shift = beta - mean * scale

    # Pass 3 (VMEM re-read): single fused multiply-add, lane-dense store.
    o_ref[...] = (x_ref[...].astype(jnp.float32) * scale + shift).astype(o_ref.dtype)


# --------------------------------------------------------------------------
# Path B: two-phase fallback for large per-channel footprints
# --------------------------------------------------------------------------
def _ssn_stats_kernel(x_ref, mean_ref, invstd_ref, s1_ref, s2_ref, *, inv_n):
    l = pl.program_id(1)

    @pl.when(l == 0)
    def _():
        s1_ref[...] = jnp.zeros_like(s1_ref)
        s2_ref[...] = jnp.zeros_like(s2_ref)

    x = x_ref[...].astype(jnp.float32)                       # (N, CT, LT)
    s1_ref[...] += jnp.sum(jnp.sum(x, axis=0), axis=1, keepdims=True)      # (CT, 1)
    s2_ref[...] += jnp.sum(jnp.sum(x * x, axis=0), axis=1, keepdims=True)  # (CT, 1)

    @pl.when(l == pl.num_programs(1) - 1)
    def _():
        mean = s1_ref[...] * inv_n
        # E[x^2] - mean^2 form (single HBM pass); clamp guards small negatives.
        var = jnp.maximum(s2_ref[...] * inv_n - mean * mean, 0.0)
        mean_ref[...] = mean
        invstd_ref[...] = jax.lax.rsqrt(var + EPS)


def _ssn_norm_kernel(gamma_ref, beta_ref, mean_ref, invstd_ref, x_ref, o_ref):
    gamma = gamma_ref[...].astype(jnp.float32)
    beta = beta_ref[...].astype(jnp.float32)
    scale = (invstd_ref[...] * gamma)[None, :, :]             # (1, CT, 1)
    shift = (beta - mean_ref[...] * invstd_ref[...] * gamma)[None, :, :]
    o_ref[...] = (x_ref[...].astype(jnp.float32) * scale + shift).astype(o_ref.dtype)


# --------------------------------------------------------------------------
# Wrapper
# --------------------------------------------------------------------------
def sub_spec_normalization(x, gamma, beta, S, *,
                           _force_two_phase=False, _block_byte_budget=None):
    """x: (N, C, F, T); gamma, beta: (C*S,).  Returns (N, C, F, T)."""
    N, C, F, T = x.shape
    assert F % S == 0
    CS = C * S
    L = (F // S) * T
    L_pad = ((L + 127) // 128) * 128            # lane-dense last dim
    inv_n = 1.0 / float(N * L)                  # true per-channel count
    pad_count = N * (L_pad - L)

    xr = x.reshape(N, CS, L)                    # contiguous, free reshape
    if L_pad != L:
        xr = jnp.pad(xr, ((0, 0), (0, 0), (0, L_pad - L)))
    g = gamma.reshape(CS, 1)
    b = beta.reshape(CS, 1)

    vmem_limit, block_budget = _vmem_budgets()
    if _block_byte_budget is not None:
        block_budget = _block_byte_budget
    quantum = _sublane_quantum(x.dtype)
    itemsize = jnp.dtype(x.dtype).itemsize

    ct = None
    if not _force_two_phase:
        ct = _pick_channel_tile(CS, N * L_pad * itemsize, quantum, block_budget)

    if ct is not None:
        # ---------------- Path A: fused single kernel -----------------------
        grid = (CS // ct,)
        out = pl.pallas_call(
            functools.partial(_ssn_fused_kernel, inv_n=inv_n, pad_count=pad_count),
            out_shape=jax.ShapeDtypeStruct((N, CS, L_pad), x.dtype),
            grid_spec=pltpu.PrefetchScalarGridSpec(
                num_scalar_prefetch=0,
                grid=grid,
                in_specs=[
                    pl.BlockSpec((ct, 1), lambda i: (i, 0)),         # gamma tile
                    pl.BlockSpec((ct, 1), lambda i: (i, 0)),         # beta tile
                    pl.BlockSpec((N, ct, L_pad), lambda i: (0, i, 0)),
                ],
                out_specs=pl.BlockSpec((N, ct, L_pad), lambda i: (0, i, 0)),
            ),
            compiler_params=pltpu.CompilerParams(
                dimension_semantics=("parallel",),
                vmem_limit_bytes=vmem_limit,
            ),
            cost_estimate=pl.CostEstimate(
                flops=int(5 * N * CS * L_pad),
                transcendentals=int(CS),
                bytes_accessed=int(2 * N * CS * L_pad * itemsize),
            ),
        )(g, b, xr)
    else:
        # ---------------- Path B: two-phase reduction fallback --------------
        min_ct = quantum if CS % quantum == 0 else CS
        lt = _pick_lane_tile(L_pad, N * min_ct * itemsize, block_budget)
        ct = _pick_channel_tile(CS, N * lt * itemsize, quantum, block_budget)
        if ct is None:
            ct = min_ct                     # best effort (may spill for huge N)
        grid = (CS // ct, L_pad // lt)

        mean, invstd = pl.pallas_call(
            functools.partial(_ssn_stats_kernel, inv_n=inv_n),
            out_shape=(jax.ShapeDtypeStruct((CS, 1), jnp.float32),
                       jax.ShapeDtypeStruct((CS, 1), jnp.float32)),
            grid_spec=pltpu.PrefetchScalarGridSpec(
                num_scalar_prefetch=0,
                grid=grid,
                in_specs=[pl.BlockSpec((N, ct, lt), lambda i, l: (0, i, l))],
                out_specs=[pl.BlockSpec((ct, 1), lambda i, l: (i, 0)),
                           pl.BlockSpec((ct, 1), lambda i, l: (i, 0))],
                scratch_shapes=[pltpu.VMEM((ct, 1), jnp.float32),
                                pltpu.VMEM((ct, 1), jnp.float32)],
            ),
            compiler_params=pltpu.CompilerParams(
                dimension_semantics=("parallel", "arbitrary"),
                vmem_limit_bytes=vmem_limit,
            ),
            cost_estimate=pl.CostEstimate(
                flops=int(3 * N * CS * L_pad),
                transcendentals=int(CS),
                bytes_accessed=int(N * CS * L_pad * itemsize),
            ),
        )(xr)

        out = pl.pallas_call(
            _ssn_norm_kernel,
            out_shape=jax.ShapeDtypeStruct((N, CS, L_pad), x.dtype),
            grid_spec=pltpu.PrefetchScalarGridSpec(
                num_scalar_prefetch=0,
                grid=grid,
                in_specs=[
                    pl.BlockSpec((ct, 1), lambda i, l: (i, 0)),      # gamma
                    pl.BlockSpec((ct, 1), lambda i, l: (i, 0)),      # beta
                    pl.BlockSpec((ct, 1), lambda i, l: (i, 0)),      # mean
                    pl.BlockSpec((ct, 1), lambda i, l: (i, 0)),      # inv_std
                    pl.BlockSpec((N, ct, lt), lambda i, l: (0, i, l)),
                ],
                out_specs=pl.BlockSpec((N, ct, lt), lambda i, l: (0, i, l)),
            ),
            compiler_params=pltpu.CompilerParams(
                dimension_semantics=("parallel", "parallel"),
                vmem_limit_bytes=vmem_limit,
            ),
            cost_estimate=pl.CostEstimate(
                flops=int(2 * N * CS * L_pad),
                transcendentals=0,
                bytes_accessed=int(2 * N * CS * L_pad * itemsize),
            ),
        )(g, b, mean, invstd, xr)

    if L_pad != L:
        out = out[:, :, :L]
    return out.reshape(N, C, F, T)


# --------------------------------------------------------------------------
# Pure-JAX reference (BatchNorm2d training-mode forward on the reshaped view)
# --------------------------------------------------------------------------
def _reference(x, gamma, beta, S):
    N, C, F, T = x.shape
    xr = x.reshape(N, C * S, F // S, T).astype(jnp.float32)
    mean = jnp.mean(xr, axis=(0, 2, 3), keepdims=True)
    var = jnp.mean((xr - mean) ** 2, axis=(0, 2, 3), keepdims=True)
    y = (xr - mean) * jax.lax.rsqrt(var + EPS)
    y = y * gamma.reshape(1, -1, 1, 1) + beta.reshape(1, -1, 1, 1)
    return y.reshape(N, C, F, T).astype(x.dtype)


if __name__ == "__main__":
    key = jax.random.PRNGKey(0)
    k1, k2, k3 = jax.random.split(key, 3)

    # --- Test 1: main fused path, lane-dense L (= 128) ----------------------
    N, C, F, T, S = 2, 4, 16, 16, 2
    CS = C * S
    x1 = jax.random.normal(k1, (N, C, F, T), dtype=jnp.float32) * 2.0 + 3.0
    g1 = 1.0 + 0.1 * jnp.arange(CS, dtype=jnp.float32)
    b1 = 0.05 * jnp.arange(CS, dtype=jnp.float32) - 0.1
    y1 = jax.block_until_ready(sub_spec_normalization(x1, g1, b1, S))
    r1 = _reference(x1, g1, b1, S)
    assert y1.shape == x1.shape
    assert jnp.max(jnp.abs(y1 - r1)) < 1e-4

    # --- Test 2: non-lane-dense L (zero-pad + exact correction) -------------
    N2, C2, F2, T2, S2 = 2, 4, 16, 10, 2
    CS2 = C2 * S2
    x2 = jax.random.normal(k2, (N2, C2, F2, T2), dtype=jnp.float32) * 1.5 - 2.0
    g2 = 0.5 + 0.05 * jnp.arange(CS2, dtype=jnp.float32)
    b2 = 0.02 * jnp.arange(CS2, dtype=jnp.float32)
    y2 = jax.block_until_ready(sub_spec_normalization(x2, g2, b2, S2))
    r2 = _reference(x2, g2, b2, S2)
    assert jnp.max(jnp.abs(y2 - r2)) < 1e-4

    # --- Test 3: forced two-phase reduction-grid fallback -------------------
    N3, C3, F3, T3, S3 = 2, 8, 32, 16, 2       # CS=16, L=256
    CS3 = C3 * S3
    x3 = jax.random.normal(k3, (N3, C3, F3, T3), dtype=jnp.float32) * 2.0 + 3.0
    g3 = 1.0 + 0.1 * jnp.arange(CS3, dtype=jnp.float32)
    b3 = 0.03 * jnp.arange(CS3, dtype=jnp.float32) - 0.2
    y3 = jax.block_until_ready(
        sub_spec_normalization(x3, g3, b3, S3,
                               _force_two_phase=True, _block_byte_budget=8192))
    r3 = _reference(x3, g3, b3, S3)
    assert jnp.max(jnp.abs(y3 - r3)) < 5e-4

    print("KERNEL_OK")
</pallas_src>

<mosaic_0001>
module attributes {stable_mosaic.version = 11 : i64} {
  func.func @_ssn_fused_kernel(%arg0: i32, %arg1: memref<8x1xf32, #tpu.memory_space<vmem>>, %arg2: memref<8x1xf32, #tpu.memory_space<vmem>>, %arg3: memref<2x8x128xf32, #tpu.memory_space<vmem>>, %arg4: memref<2x8x128xf32, #tpu.memory_space<vmem>>) attributes {dimension_semantics = [#tpu.dimension_semantics<parallel>], iteration_bounds = array<i64: 1>, scalar_prefetch = 0 : i64, scratch_operands = 0 : i64, tpu.core_type = #tpu.core_type<tc>, window_params = [{transform_indices = @transform_0, window_bounds = array<i64: 8, 1>}, {transform_indices = @transform_1, window_bounds = array<i64: 8, 1>}, {transform_indices = @transform_2, window_bounds = array<i64: 2, 8, 128>}, {transform_indices = @transform_3, window_bounds = array<i64: 2, 8, 128>}]} {
    %c0 = arith.constant 0 : index
    %c0_0 = arith.constant 0 : index
    %c0_1 = arith.constant 0 : index
    %0 = vector.load %arg3[%c0, %c0_0, %c0_1] : memref<2x8x128xf32, #tpu.memory_space<vmem>>, vector<2x8x128xf32>
    %cst = arith.constant dense<0.000000e+00> : vector<8xf32>
    %1 = vector.multi_reduction <add>, %0, %cst [0, 2] : vector<2x8x128xf32> to vector<8xf32>
    %2 = vector.shape_cast %1 : vector<8xf32> to vector<1x8x1xf32>
    %cst_2 = arith.constant 3.906250e-03 : f32
    %3 = vector.broadcast %cst_2 : f32 to vector<1x8x1xf32>
    %4 = arith.mulf %2, %3 : vector<1x8x1xf32>
    %c0_3 = arith.constant 0 : index
    %c0_4 = arith.constant 0 : index
    %c0_5 = arith.constant 0 : index
    %5 = vector.load %arg3[%c0_3, %c0_4, %c0_5] : memref<2x8x128xf32, #tpu.memory_space<vmem>>, vector<2x8x128xf32>
    %6 = vector.broadcast %4 : vector<1x8x1xf32> to vector<2x8x128xf32>
    %7 = arith.subf %5, %6 : vector<2x8x128xf32>
    %8 = arith.mulf %7, %7 : vector<2x8x128xf32>
    %cst_6 = arith.constant dense<0.000000e+00> : vector<8xf32>
    %9 = vector.multi_reduction <add>, %8, %cst_6 [0, 2] : vector<2x8x128xf32> to vector<8xf32>
    %10 = vector.shape_cast %9 : vector<8xf32> to vector<1x8x1xf32>
    %cst_7 = arith.constant 3.906250e-03 : f32
    %11 = vector.broadcast %cst_7 : f32 to vector<1x8x1xf32>
    %12 = arith.mulf %10, %11 : vector<1x8x1xf32>
    %cst_8 = arith.constant 0.000000e+00 : f32
    %13 = vector.broadcast %cst_8 : f32 to vector<1x8x1xf32>
    %14 = arith.maximumf %12, %13 : vector<1x8x1xf32>
    %cst_9 = arith.constant 9.99999974E-6 : f32
    %15 = vector.broadcast %cst_9 : f32 to vector<1x8x1xf32>
    %16 = arith.addf %14, %15 : vector<1x8x1xf32>
    %17 = math.rsqrt %16 : vector<1x8x1xf32>
    %c0_10 = arith.constant 0 : index
    %c0_11 = arith.constant 0 : index
    %18 = vector.load %arg1[%c0_10, %c0_11] : memref<8x1xf32, #tpu.memory_space<vmem>>, vector<8x1xf32>
    %19 = vector.shape_cast %18 : vector<8x1xf32> to vector<1x8x1xf32>
    %c0_12 = arith.constant 0 : index
    %c0_13 = arith.constant 0 : index
    %20 = vector.load %arg2[%c0_12, %c0_13] : memref<8x1xf32, #tpu.memory_space<vmem>>, vector<8x1xf32>
    %21 = vector.shape_cast %20 : vector<8x1xf32> to vector<1x8x1xf32>
    %22 = arith.mulf %17, %19 : vector<1x8x1xf32>
    %23 = arith.mulf %4, %22 : vector<1x8x1xf32>
    %24 = arith.subf %21, %23 : vector<1x8x1xf32>
    %c0_14 = arith.constant 0 : index
    %c0_15 = arith.constant 0 : index
    %c0_16 = arith.constant 0 : index
    %25 = vector.load %arg3[%c0_14, %c0_15, %c0_16] : memref<2x8x128xf32, #tpu.memory_space<vmem>>, vector<2x8x128xf32>
    %26 = vector.broadcast %22 : vector<1x8x1xf32> to vector<2x8x128xf32>
    %27 = arith.mulf %25, %26 : vector<2x8x128xf32>
    %28 = vector.broadcast %24 : vector<1x8x1xf32> to vector<2x8x128xf32>
    %29 = arith.addf %27, %28 : vector<2x8x128xf32>
    %c0_17 = arith.constant 0 : index
    %c0_18 = arith.constant 0 : index
    %c0_19 = arith.constant 0 : index
    %30 = vector.load %arg4[%c0_17, %c0_18, %c0_19] : memref<2x8x128xf32, #tpu.memory_space<vmem>>, vector<2x8x128xf32>
    tpu.vector_store %arg4[%c0_17, %c0_18, %c0_19], %29 {strides = array<i32>} : memref<2x8x128xf32, #tpu.memory_space<vmem>>, vector<2x8x128xf32>,
    return
  }
  func.func @transform_0(%arg0: i32) -> (i32, i32) {
    %c0_i32 = arith.constant 0 : i32
    %c0_i32_0 = arith.constant 0 : i32
    return %arg0, %c0_i32 : i32, i32
  }
  func.func @transform_1(%arg0: i32) -> (i32, i32) {
    %c0_i32 = arith.constant 0 : i32
    %c0_i32_0 = arith.constant 0 : i32
    return %arg0, %c0_i32 : i32, i32
  }
  func.func @transform_2(%arg0: i32) -> (i32, i32, i32) {
    %c0_i32 = arith.constant 0 : i32
    %c0_i32_0 = arith.constant 0 : i32
    %c0_i32_1 = arith.constant 0 : i32
    return %c0_i32, %arg0, %c0_i32_0 : i32, i32, i32
  }
  func.func @transform_3(%arg0: i32) -> (i32, i32, i32) {
    %c0_i32 = arith.constant 0 : i32
    %c0_i32_0 = arith.constant 0 : i32
    %c0_i32_1 = arith.constant 0 : i32
    return %c0_i32, %arg0, %c0_i32_0 : i32, i32, i32
  }
}

</mosaic_0001>

<llo_original>
// kernel: tpu_custom_call.1
$region0: #{tpu_custom_call.1}
  #allocation0 [shape = 'u32[]', space=smem, size = 0x4, offset = 0x4, fixed_abs, tag = 'smem constant byte address 0x4 - core index']
  #allocation1 [shape = 'u32[144,128]{1,0:T(1,128)}', space=vmem, size = 0x12000, scoped, tag = 'internal scratch']
  %s0 = inlined_call_operand.vmem [shape: f32[8,1], index: 0, kind: input, shape index: {}]
  %s1 = inlined_call_operand.vmem [shape: f32[8,1], index: 1, kind: input, shape index: {}]
  %s2 = inlined_call_operand.vmem [shape: f32[2,8,128], index: 2, kind: input, shape index: {}]
  %s3 = inlined_call_operand.hbm [shape: f32[2,8,128], index: 3, kind: output, shape index: {}]
  %s4 = sld [smem:[#allocation0]]
  $region22: #{tpu_custom_call.1} parent=0
    _
  %s6 = ssub.s32 1, %s4
  %s7 = scalar_select 0, %s6, %s4
  $region1: #{tpu_custom_call.1} parent=0
    #allocation2 [shape = 'u8[8192]{0}', space=vmem, size = 0x2000, scoped, tag = 'output window, operand 0, single buffered']
    #allocation3 [shape = 's32[1]{0}', space=sflag, size = 0x4, scoped, tag = 'scoped memory for tpu_custom_call.1']
    %8 = vsyncpa [#allocation3], 0
    // Predicated region
    $region2: #{tpu_custom_call.1} parent=1 // pred_check
      _
    $region3: #{tpu_custom_call.1} parent=1 // pred_check_branch
      %10 = sbr.rel (0) target = $region5
    $region4: #{tpu_custom_call.1} parent=1 // pred_region
      _
    $region5: #{tpu_custom_call.1} parent=1 // pred_fallthru
      _
    // Predicated region
    $region6: #{tpu_custom_call.1} parent=1 // pred_check
      _
    $region7: #{tpu_custom_call.1} parent=1 // pred_check_branch
      %12 = sbr.rel (0) target = $region9
    $region8: #{tpu_custom_call.1} parent=1 // pred_region
      _
    $region9: #{tpu_custom_call.1} parent=1 // pred_fallthru
      _
    // Predicated region
    $region10: #{tpu_custom_call.1} parent=1 // pred_check
      _
    $region11: #{tpu_custom_call.1} parent=1 // pred_check_branch
      %14 = sbr.rel (0) target = $region13
    $region12: #{tpu_custom_call.1} parent=1 // pred_region
      _
    $region13: #{tpu_custom_call.1} parent=1 // pred_fallthru
      _
    %v15 = vld [vmem:[%s2] sm:$0xff]
    %v16 = vld [vmem:[%s2 + $0x8] sm:$0xff]
    %v17 = vadd.f32 %v15, %v16
    %18 = vadd.xlane.f32.xlu0 %v17
    %v19 = vpop.xlane.xlu0 %18
    %v20 = vmul.f32 %v19, 0.00390625
    %v21 = vsub.f32 %v15, %v20
    %v22 = vsub.f32 %v16, %v20
    %v23 = vmul.f32 %v21, %v21
    %v24 = vmul.f32 %v22, %v22
    %v25 = vadd.f32 %v23, %v24
    %26 = vadd.xlane.f32.xlu0 %v25
    %v27 = vpop.xlane.xlu0 %26
    %v28 = vmul.f32 %v27, 0.00390625
    %v29 = vmax.f32 %v28, 0.0
    %v30 = vadd.f32 %v29, 1e-05
    %v31 = vrsqrt.pop %v30
    %v32 = vld [vmem:[%s0] sm:$0xff]
    %v33 = vld [vmem:[%s1] sm:$0xff]
    %v34 = vmul.f32 %v31, %v32
    %v35 = vmul.f32 %v20, %v34
    %v36 = vsub.f32 %v33, %v35
    %38 = vset.pattern.permute.xlu0 0
    %39 = vperm.xlu0 %38, %v34
    %v40 = vpop.permute.xlu0 %39
    %v42 = vmul.f32 %v15, %v40
    %v43 = vmul.f32 %v16, %v40
    %45 = vset.pattern.permute.xlu0 0
    %46 = vperm.xlu0 %45, %v36
    %v47 = vpop.permute.xlu0 %46
    %v49 = vadd.f32 %v42, %v47
    %v50 = vadd.f32 %v43, %v47
    %51 = vst [vmem:[#allocation2] sm:$0xff] %v49
    %52 = vst [vmem:[#allocation2 + $0x8] sm:$0xff] %v50
    // Predicated region
    $region14: #{tpu_custom_call.1} parent=1 // pred_check
      _
    $region15: #{tpu_custom_call.1} parent=1 // pred_check_branch
      %54 = sbr.rel (0) target = $region17
    $region16: #{tpu_custom_call.1} parent=1 // pred_region
      %s56 = ssub.s32 256, 256
      %57 = vsyncadd [#allocation3], %s56
      %s58 = sshll.u32 [#allocation2], 4
      %s59 = int_to_ptr.vmem [resolvable:$true] %s58
      %64 = dma.vmem_to_hbm [thread:$0]  %s59, 256, %s3, [#allocation3], 128, 128, 8
    $region17: #{tpu_custom_call.1} parent=1 // pred_fallthru
      _
    // Predicated region
    $region18: #{tpu_custom_call.1} parent=1 // pred_check
      _
    $region19: #{tpu_custom_call.1} parent=1 // pred_check_branch
      %66 = sbr.rel (0) target = $region21
    $region20: #{tpu_custom_call.1} parent=1 // pred_region
      %67 = dma.done [#allocation3], 256
    $region21: #{tpu_custom_call.1} parent=1 // pred_fallthru
      _
    %68 = vsyncpa [#allocation3], 1

</llo_original>
